<compile_context>
chip_gen: v6e
topology: v6e:2x2x1
jax: 0.10.0
libtpu: 0.0.40
codegen_flags: <defaults>
</compile_context>

<pallas_src>
import jax
import jax.numpy as jnp
from jax.experimental import pallas as pl
from jax.experimental.pallas import tpu as pltpu

# ---- module hyper-parameters (from __init__ signature) ----------------------
DROPOUT_P = 0.3
IMG_SIZE = 16
N_CHANNELS = 4
NUM_CLASSES = 10
EMB_DIM = 32
HIDDEN = 32
D_IMG = N_CHANNELS * IMG_SIZE * IMG_SIZE


def _disc_kernel(xf_ref, lab_ref, mask_ref, w1x_ref, w2_ref, b2_ref, out_ref):
    # Main matmul: [TB, d_img]bf16 @ [d_img, HIDDEN]bf16 -> f32 on the MXU.
    h = jnp.dot(xf_ref[...], w1x_ref[...], preferred_element_type=jnp.float32)

    # Label-embedding contribution (emb @ W1e + b1)[labels], precomputed.
    h = h + lab_ref[...]

    # LeakyReLU(0.2) in f32.
    h = jnp.where(h > 0, h, 0.2 * h)

    # Inverted dropout: mask is keep/(1-p) or 0, precomputed per-row.
    h = h * mask_ref[...]

    # Second linear [HIDDEN] -> 1: VPU multiply + lane reduce (MXU with N=1
    # would use 1/256 of the array width); b2 is an SMEM scalar.
    logit = jnp.sum(h * w2_ref[...], axis=-1) + b2_ref[0]

    # Lane-dense store: batch on the lane axis, (1, TB).
    out_ref[...] = jax.nn.sigmoid(logit)[None, :]


@jax.jit
def base_discriminator_forward(x, labels, params, seed):
    """x: f32[B, C, H, W] (NCHW, like the PyTorch reference); labels: i32[B]."""
    B = x.shape[0]
    x_flat = x.reshape(B, -1).astype(jnp.bfloat16)                  # [B, d_img]
    d_img = x_flat.shape[1]

    # Fold the label path out of the kernel: table [NUM_CLASSES, HIDDEN].
    table = jnp.dot(params["emb"], params["w1e"]) + params["b1"]
    lab_contrib = jnp.take(table, labels, axis=0).astype(jnp.float32)  # [B, HIDDEN]

    # Wrapper-side inverted-dropout mask (deterministic in `seed`).
    key = jax.random.PRNGKey(seed)
    keep = jax.random.bernoulli(key, 1.0 - DROPOUT_P, (B, HIDDEN))
    mask = keep.astype(jnp.float32) * (1.0 / (1.0 - DROPOUT_P))

    # Batch tiling: TB multiple of 8, capped so weights + 2x(TB, d_img) tiles
    # stay far under the 32 MiB scoped VMEM default (also fine on v7x's 64 MiB).
    if B >= 256:
        TB = 256
    else:
        TB = max(8, ((B + 7) // 8) * 8)
    padded_B = ((B + TB - 1) // TB) * TB
    pad = padded_B - B
    if pad:
        x_flat = jnp.pad(x_flat, ((0, pad), (0, 0)))
        lab_contrib = jnp.pad(lab_contrib, ((0, pad), (0, 0)))
        mask = jnp.pad(mask, ((0, pad), (0, 0)))
    num_tiles = padded_B // TB

    w1x = params["w1x"].astype(jnp.bfloat16)                        # [d_img, HIDDEN]
    w2_row = params["w2"].reshape(1, HIDDEN).astype(jnp.float32)    # [1, HIDDEN]
    b2 = params["b2"].reshape(1).astype(jnp.float32)                # [1] (SMEM)

    grid_spec = pltpu.PrefetchScalarGridSpec(
        num_scalar_prefetch=0,
        grid=(num_tiles,),
        in_specs=[
            pl.BlockSpec((TB, d_img), lambda i: (i, 0)),            # x tile
            pl.BlockSpec((TB, HIDDEN), lambda i: (i, 0)),           # label contrib
            pl.BlockSpec((TB, HIDDEN), lambda i: (i, 0)),           # dropout mask
            pl.BlockSpec((d_img, HIDDEN), lambda i: (0, 0)),        # W1x (resident)
            pl.BlockSpec((1, HIDDEN), lambda i: (0, 0)),            # W2 row (resident)
            pl.BlockSpec(memory_space=pltpu.MemorySpace.SMEM),      # b2 scalar
        ],
        out_specs=pl.BlockSpec((1, TB), lambda i: (0, i)),          # lane-dense out
    )

    out = pl.pallas_call(
        _disc_kernel,
        out_shape=jax.ShapeDtypeStruct((1, padded_B), jnp.float32),
        grid_spec=grid_spec,
        compiler_params=pltpu.CompilerParams(
            dimension_semantics=("parallel",)),
    )(x_flat, lab_contrib, mask, w1x, w2_row, b2)

    return out.reshape(padded_B)[:B].reshape(B, 1)


def init_params(key):
    k = jax.random.split(key, 5)
    scale = 0.02
    return {
        "emb": scale * jax.random.normal(k[0], (NUM_CLASSES, EMB_DIM), jnp.float32),
        "w1x": scale * jax.random.normal(k[1], (D_IMG, HIDDEN), jnp.float32),
        "w1e": scale * jax.random.normal(k[2], (EMB_DIM, HIDDEN), jnp.float32),
        "b1": jnp.zeros((1, HIDDEN), jnp.float32),
        "w2": scale * jax.random.normal(k[3], (HIDDEN, 1), jnp.float32),
        "b2": jnp.zeros((1, 1), jnp.float32),
    }


if __name__ == "__main__":
    key = jax.random.PRNGKey(0)
    k_x, k_lab, k_param = jax.random.split(key, 3)

    B = 2
    x = jax.random.normal(k_x, (B, N_CHANNELS, IMG_SIZE, IMG_SIZE), jnp.float32)
    labels = jax.random.randint(k_lab, (B,), 0, NUM_CLASSES, jnp.int32)
    params = init_params(k_param)

    out = base_discriminator_forward(x, labels, params, seed=0)
    out = jax.block_until_ready(out)

    assert out.shape == (B, 1) and out.dtype == jnp.float32
    assert bool(jnp.all(jnp.isfinite(out)))
    assert bool(jnp.all((out >= 0.0) & (out <= 1.0)))
    print("KERNEL_OK")
</pallas_src>

<mosaic_0001>
module attributes {stable_mosaic.version = 11 : i64} {
  func.func @_disc_kernel(%arg0: i32, %arg1: memref<8x1024xbf16, #tpu.memory_space<vmem>>, %arg2: memref<8x32xf32, #tpu.memory_space<vmem>>, %arg3: memref<8x32xf32, #tpu.memory_space<vmem>>, %arg4: memref<1024x32xbf16, #tpu.memory_space<vmem>>, %arg5: memref<1x32xf32, #tpu.memory_space<vmem>>, %arg6: memref<1xf32, #tpu.memory_space<smem>>, %arg7: memref<1x8xf32, #tpu.memory_space<vmem>>) attributes {dimension_semantics = [#tpu.dimension_semantics<parallel>], iteration_bounds = array<i64: 1>, scalar_prefetch = 0 : i64, scratch_operands = 0 : i64, tpu.core_type = #tpu.core_type<tc>, window_params = [{transform_indices = @transform_0, window_bounds = array<i64: 8, 1024>}, {transform_indices = @transform_1, window_bounds = array<i64: 8, 32>}, {transform_indices = @transform_2, window_bounds = array<i64: 8, 32>}, {pipeline_mode = #tpu.pipeline_mode<synchronous>, transform_indices = @transform_3, window_bounds = array<i64: 1024, 32>}, {pipeline_mode = #tpu.pipeline_mode<synchronous>, transform_indices = @transform_4, window_bounds = array<i64: 1, 32>}, {transform_indices = @transform_5, window_bounds = array<i64: 1>}, {transform_indices = @transform_6, window_bounds = array<i64: 1, 8>}]} {
    %c0 = arith.constant 0 : index
    %c0_0 = arith.constant 0 : index
    %0 = vector.load %arg1[%c0, %c0_0] : memref<8x1024xbf16, #tpu.memory_space<vmem>>, vector<8x1024xbf16>
    %c0_1 = arith.constant 0 : index
    %c0_2 = arith.constant 0 : index
    %1 = vector.load %arg4[%c0_1, %c0_2] : memref<1024x32xbf16, #tpu.memory_space<vmem>>, vector<1024x32xbf16>
    %cst = arith.constant dense<0.000000e+00> : vector<8x32xf32>
    %2 = tpu.matmul %0, %1, %cst {dimension_numbers = #tpu.dot_dimension_numbers<[1], [0], [0], [1], [0, 0, 1, 1], [], []>} : vector<8x1024xbf16>, vector<1024x32xbf16>, vector<8x32xf32> -> vector<8x32xf32>
    %c0_3 = arith.constant 0 : index
    %c0_4 = arith.constant 0 : index
    %3 = vector.load %arg2[%c0_3, %c0_4] : memref<8x32xf32, #tpu.memory_space<vmem>>, vector<8x32xf32>
    %4 = arith.addf %2, %3 : vector<8x32xf32>
    %cst_5 = arith.constant 0.000000e+00 : f32
    %5 = vector.broadcast %cst_5 : f32 to vector<8x32xf32>
    %6 = arith.cmpf ogt, %4, %5 : vector<8x32xf32>
    %cst_6 = arith.constant 2.000000e-01 : f32
    %7 = vector.broadcast %cst_6 : f32 to vector<8x32xf32>
    %8 = arith.mulf %7, %4 : vector<8x32xf32>
    %9 = arith.select %6, %4, %8 : vector<8x32xi1>, vector<8x32xf32>
    %c0_7 = arith.constant 0 : index
    %c0_8 = arith.constant 0 : index
    %10 = vector.load %arg3[%c0_7, %c0_8] : memref<8x32xf32, #tpu.memory_space<vmem>>, vector<8x32xf32>
    %11 = arith.mulf %9, %10 : vector<8x32xf32>
    %c0_9 = arith.constant 0 : index
    %c0_10 = arith.constant 0 : index
    %12 = vector.load %arg5[%c0_9, %c0_10] : memref<1x32xf32, #tpu.memory_space<vmem>>, vector<1x32xf32>
    %13 = vector.broadcast %12 : vector<1x32xf32> to vector<8x32xf32>
    %14 = arith.mulf %11, %13 : vector<8x32xf32>
    %cst_11 = arith.constant dense<0.000000e+00> : vector<8xf32>
    %15 = vector.multi_reduction <add>, %14, %cst_11 [1] : vector<8x32xf32> to vector<8xf32>
    %c0_12 = arith.constant 0 : index
    %16 = memref.load %arg6[%c0_12] : memref<1xf32, #tpu.memory_space<smem>>
    %17 = vector.broadcast %16 : f32 to vector<8xf32>
    %18 = arith.addf %15, %17 : vector<8xf32>
    %19 = arith.negf %18 : vector<8xf32>
    %20 = math.exp %19 : vector<8xf32>
    %cst_13 = arith.constant 1.000000e+00 : f32
    %21 = vector.broadcast %cst_13 : f32 to vector<8xf32>
    %22 = arith.addf %21, %20 : vector<8xf32>
    %23 = arith.divf %21, %22 : vector<8xf32>
    %24 = vector.shape_cast %23 : vector<8xf32> to vector<1x8xf32>
    %c0_14 = arith.constant 0 : index
    %c0_15 = arith.constant 0 : index
    %25 = vector.load %arg7[%c0_14, %c0_15] : memref<1x8xf32, #tpu.memory_space<vmem>>, vector<1x8xf32>
    tpu.vector_store %arg7[%c0_14, %c0_15], %24 {strides = array<i32>} : memref<1x8xf32, #tpu.memory_space<vmem>>, vector<1x8xf32>,
    return
  }
  func.func @transform_0(%arg0: i32) -> (i32, i32) {
    %c0_i32 = arith.constant 0 : i32
    %c0_i32_0 = arith.constant 0 : i32
    return %arg0, %c0_i32 : i32, i32
  }
  func.func @transform_1(%arg0: i32) -> (i32, i32) {
    %c0_i32 = arith.constant 0 : i32
    %c0_i32_0 = arith.constant 0 : i32
    return %arg0, %c0_i32 : i32, i32
  }
  func.func @transform_2(%arg0: i32) -> (i32, i32) {
    %c0_i32 = arith.constant 0 : i32
    %c0_i32_0 = arith.constant 0 : i32
    return %arg0, %c0_i32 : i32, i32
  }
  func.func @transform_3(%arg0: i32) -> (i32, i32) {
    %c0_i32 = arith.constant 0 : i32
    %c0_i32_0 = arith.constant 0 : i32
    %c0_i32_1 = arith.constant 0 : i32
    return %c0_i32, %c0_i32_0 : i32, i32
  }
  func.func @transform_4(%arg0: i32) -> (i32, i32) {
    %c0_i32 = arith.constant 0 : i32
    %c0_i32_0 = arith.constant 0 : i32
    %c0_i32_1 = arith.constant 0 : i32
    return %c0_i32, %c0_i32_0 : i32, i32
  }
  func.func @transform_5(%arg0: i32) -> i32 {
    %c0_i32 = arith.constant 0 : i32
    %c0_i32_0 = arith.constant 0 : i32
    return %c0_i32 : i32
  }
  func.func @transform_6(%arg0: i32) -> (i32, i32) {
    %c0_i32 = arith.constant 0 : i32
    %c0_i32_0 = arith.constant 0 : i32
    return %c0_i32, %arg0 : i32, i32
  }
}

</mosaic_0001>

<llo_original>
// kernel: base_discriminator_forward.1
$region0: #{base_discriminator_forward.1}
  #allocation0 [shape = 'u32[]', space=smem, size = 0x4, offset = 0x4, fixed_abs, tag = 'smem constant byte address 0x4 - core index']
  #allocation1 [shape = 'u32[144,128]{1,0:T(1,128)}', space=vmem, size = 0x12000, scoped, tag = 'internal scratch']
  #allocation2 [shape = 'f32[1]{0:T(128)S(6)}', space=smem, size = 0x200, scoped, tag = 'scoped memory for base_discriminator_forward.1']
  %s0 = inlined_call_operand.vmem [shape: bf16[8,1024], index: 0, kind: input, shape index: {}]
  %s1 = inlined_call_operand.vmem [shape: f32[8,32], index: 1, kind: input, shape index: {}]
  %s2 = inlined_call_operand.vmem [shape: f32[8,32], index: 2, kind: input, shape index: {}]
  %s3 = inlined_call_operand.vmem [shape: bf16[1024,32], index: 3, kind: input, shape index: {}]
  %s4 = inlined_call_operand.vmem [shape: f32[1,32], index: 4, kind: input, shape index: {}]
  %s5 = inlined_call_operand.<no memory space> [shape: f32[1], index: 5, kind: input, shape index: {}]
  %s6 = inlined_call_operand.vmem [shape: f32[1,8], index: 6, kind: output, shape index: {}]
  %s7 = sld [smem:[#allocation0]]
  $region34: #{base_discriminator_forward.1} parent=0
    _
  %s9 = ssub.s32 1, %s7
  %s10 = scalar_select 0, %s9, %s7
  %11 = sst [smem:[#allocation2]] %s5
  // Predicated region
  $region2: #{base_discriminator_forward.1} parent=0 // pred_check
    _
  $region3: #{base_discriminator_forward.1} parent=0 // pred_check_branch
    %13 = sbr.rel (0) target = $region5
  $region4: #{base_discriminator_forward.1} parent=0 // pred_region
    _
  $region5: #{base_discriminator_forward.1} parent=0 // pred_fallthru
    _
  // Predicated region
  $region6: #{base_discriminator_forward.1} parent=0 // pred_check
    _
  $region7: #{base_discriminator_forward.1} parent=0 // pred_check_branch
    %15 = sbr.rel (0) target = $region9
  $region8: #{base_discriminator_forward.1} parent=0 // pred_region
    _
  $region9: #{base_discriminator_forward.1} parent=0 // pred_fallthru
    _
  // Predicated region
  $region10: #{base_discriminator_forward.1} parent=0 // pred_check
    _
  $region11: #{base_discriminator_forward.1} parent=0 // pred_check_branch
    %17 = sbr.rel (0) target = $region13
  $region12: #{base_discriminator_forward.1} parent=0 // pred_region
    _
  $region13: #{base_discriminator_forward.1} parent=0 // pred_fallthru
    _
  // Predicated region
  $region14: #{base_discriminator_forward.1} parent=0 // pred_check
    _
  $region15: #{base_discriminator_forward.1} parent=0 // pred_check_branch
    %19 = sbr.rel (0) target = $region17
  $region16: #{base_discriminator_forward.1} parent=0 // pred_region
    _
  $region17: #{base_discriminator_forward.1} parent=0 // pred_fallthru
    _
  // Predicated region
  $region18: #{base_discriminator_forward.1} parent=0 // pred_check
    _
  $region19: #{base_discriminator_forward.1} parent=0 // pred_check_branch
    %21 = sbr.rel (0) target = $region21
  $region20: #{base_discriminator_forward.1} parent=0 // pred_region
    _
  $region21: #{base_discriminator_forward.1} parent=0 // pred_fallthru
    _
  // Predicated region
  $region22: #{base_discriminator_forward.1} parent=0 // pred_check
    _
  $region23: #{base_discriminator_forward.1} parent=0 // pred_check_branch
    %23 = sbr.rel (0) target = $region25
  $region24: #{base_discriminator_forward.1} parent=0 // pred_region
    _
  $region25: #{base_discriminator_forward.1} parent=0 // pred_fallthru
    _
  %v25 = vld [vmem:[%s0] sm:$0xff]
  %v26 = vld [vmem:[%s0 + $0x8] sm:$0xff]
  %v27 = vld [vmem:[%s0 + $0x10] sm:$0xff]
  %v28 = vld [vmem:[%s0 + $0x18] sm:$0xff]
  %v29 = vld [vmem:[%s3] sm:$0xf]
  %v30 = vld [vmem:[%s3 + $0x4] sm:$0xf]
  %v31 = vld [vmem:[%s3 + $0x8] sm:$0xf]
  %v32 = vld [vmem:[%s3 + $0xc] sm:$0xf]
  %v33 = vld [vmem:[%s3 + $0x10] sm:$0xf]
  %v34 = vld [vmem:[%s3 + $0x14] sm:$0xf]
  %v35 = vld [vmem:[%s3 + $0x18] sm:$0xf]
  %v36 = vld [vmem:[%s3 + $0x1c] sm:$0xf]
  %v37 = vld [vmem:[%s3 + $0x20] sm:$0xf]
  %v38 = vld [vmem:[%s3 + $0x24] sm:$0xf]
  %v39 = vld [vmem:[%s3 + $0x28] sm:$0xf]
  %v40 = vld [vmem:[%s3 + $0x2c] sm:$0xf]
  %v41 = vld [vmem:[%s3 + $0x30] sm:$0xf]
  %v42 = vld [vmem:[%s3 + $0x34] sm:$0xf]
  %v43 = vld [vmem:[%s3 + $0x38] sm:$0xf]
  %v44 = vld [vmem:[%s3 + $0x3c] sm:$0xf]
  %v45 = vld [vmem:[%s3 + $0x40] sm:$0xf]
  %v46 = vld [vmem:[%s3 + $0x44] sm:$0xf]
  %v47 = vld [vmem:[%s3 + $0x48] sm:$0xf]
  %v48 = vld [vmem:[%s3 + $0x4c] sm:$0xf]
  %v49 = vld [vmem:[%s3 + $0x50] sm:$0xf]
  %v50 = vld [vmem:[%s3 + $0x54] sm:$0xf]
  %v51 = vld [vmem:[%s3 + $0x58] sm:$0xf]
  %v52 = vld [vmem:[%s3 + $0x5c] sm:$0xf]
  %v53 = vld [vmem:[%s3 + $0x60] sm:$0xf]
  %v54 = vld [vmem:[%s3 + $0x64] sm:$0xf]
  %v55 = vld [vmem:[%s3 + $0x68] sm:$0xf]
  %v56 = vld [vmem:[%s3 + $0x6c] sm:$0xf]
  %v57 = vld [vmem:[%s3 + $0x70] sm:$0xf]
  %v58 = vld [vmem:[%s3 + $0x74] sm:$0xf]
  %v59 = vld [vmem:[%s3 + $0x78] sm:$0xf]
  %v60 = vld [vmem:[%s3 + $0x7c] sm:$0xf]
  %v61 = vld [vmem:[%s3 + $0x80] sm:$0xf]
  %v62 = vld [vmem:[%s3 + $0x84] sm:$0xf]
  %v63 = vld [vmem:[%s3 + $0x88] sm:$0xf]
  %v64 = vld [vmem:[%s3 + $0x8c] sm:$0xf]
  %v65 = vld [vmem:[%s3 + $0x90] sm:$0xf]
  %v66 = vld [vmem:[%s3 + $0x94] sm:$0xf]
  %v67 = vld [vmem:[%s3 + $0x98] sm:$0xf]
  %v68 = vld [vmem:[%s3 + $0x9c] sm:$0xf]
  %v69 = vld [vmem:[%s3 + $0xa0] sm:$0xf]
  %v70 = vld [vmem:[%s3 + $0xa4] sm:$0xf]
  %v71 = vld [vmem:[%s3 + $0xa8] sm:$0xf]
  %v72 = vld [vmem:[%s3 + $0xac] sm:$0xf]
  %v73 = vld [vmem:[%s3 + $0xb0] sm:$0xf]
  %v74 = vld [vmem:[%s3 + $0xb4] sm:$0xf]
  %v75 = vld [vmem:[%s3 + $0xb8] sm:$0xf]
  %v76 = vld [vmem:[%s3 + $0xbc] sm:$0xf]
  %v77 = vld [vmem:[%s3 + $0xc0] sm:$0xf]
  %v78 = vld [vmem:[%s3 + $0xc4] sm:$0xf]
  %v79 = vld [vmem:[%s3 + $0xc8] sm:$0xf]
  %v80 = vld [vmem:[%s3 + $0xcc] sm:$0xf]
  %v81 = vld [vmem:[%s3 + $0xd0] sm:$0xf]
  %v82 = vld [vmem:[%s3 + $0xd4] sm:$0xf]
  %v83 = vld [vmem:[%s3 + $0xd8] sm:$0xf]
  %v84 = vld [vmem:[%s3 + $0xdc] sm:$0xf]
  %v85 = vld [vmem:[%s3 + $0xe0] sm:$0xf]
  %v86 = vld [vmem:[%s3 + $0xe4] sm:$0xf]
  %v87 = vld [vmem:[%s3 + $0xe8] sm:$0xf]
  %v88 = vld [vmem:[%s3 + $0xec] sm:$0xf]
  %v89 = vld [vmem:[%s3 + $0xf0] sm:$0xf]
  %v90 = vld [vmem:[%s3 + $0xf4] sm:$0xf]
  %v91 = vld [vmem:[%s3 + $0xf8] sm:$0xf]
  %v92 = vld [vmem:[%s3 + $0xfc] sm:$0xf]
  %v93 = vld [vmem:[%s3 + $0x100] sm:$0xf]
  %v94 = vld [vmem:[%s3 + $0x104] sm:$0xf]
  %v95 = vld [vmem:[%s3 + $0x108] sm:$0xf]
  %v96 = vld [vmem:[%s3 + $0x10c] sm:$0xf]
  %v97 = vld [vmem:[%s3 + $0x110] sm:$0xf]
  %v98 = vld [vmem:[%s3 + $0x114] sm:$0xf]
  %v99 = vld [vmem:[%s3 + $0x118] sm:$0xf]
  %v100 = vld [vmem:[%s3 + $0x11c] sm:$0xf]
  %v101 = vld [vmem:[%s3 + $0x120] sm:$0xf]
  %v102 = vld [vmem:[%s3 + $0x124] sm:$0xf]
  %v103 = vld [vmem:[%s3 + $0x128] sm:$0xf]
  %v104 = vld [vmem:[%s3 + $0x12c] sm:$0xf]
  %v105 = vld [vmem:[%s3 + $0x130] sm:$0xf]
  %v106 = vld [vmem:[%s3 + $0x134] sm:$0xf]
  %v107 = vld [vmem:[%s3 + $0x138] sm:$0xf]
  %v108 = vld [vmem:[%s3 + $0x13c] sm:$0xf]
  %v109 = vld [vmem:[%s3 + $0x140] sm:$0xf]
  %v110 = vld [vmem:[%s3 + $0x144] sm:$0xf]
  %v111 = vld [vmem:[%s3 + $0x148] sm:$0xf]
  %v112 = vld [vmem:[%s3 + $0x14c] sm:$0xf]
  %v113 = vld [vmem:[%s3 + $0x150] sm:$0xf]
  %v114 = vld [vmem:[%s3 + $0x154] sm:$0xf]
  %v115 = vld [vmem:[%s3 + $0x158] sm:$0xf]
  %v116 = vld [vmem:[%s3 + $0x15c] sm:$0xf]
  %v117 = vld [vmem:[%s3 + $0x160] sm:$0xf]
  %v118 = vld [vmem:[%s3 + $0x164] sm:$0xf]
  %v119 = vld [vmem:[%s3 + $0x168] sm:$0xf]
  %v120 = vld [vmem:[%s3 + $0x16c] sm:$0xf]
  %v121 = vld [vmem:[%s3 + $0x170] sm:$0xf]
  %v122 = vld [vmem:[%s3 + $0x174] sm:$0xf]
  %v123 = vld [vmem:[%s3 + $0x178] sm:$0xf]
  %v124 = vld [vmem:[%s3 + $0x17c] sm:$0xf]
  %v125 = vld [vmem:[%s3 + $0x180] sm:$0xf]
  %v126 = vld [vmem:[%s3 + $0x184] sm:$0xf]
  %v127 = vld [vmem:[%s3 + $0x188] sm:$0xf]
  %v128 = vld [vmem:[%s3 + $0x18c] sm:$0xf]
  %v129 = vld [vmem:[%s3 + $0x190] sm:$0xf]
  %v130 = vld [vmem:[%s3 + $0x194] sm:$0xf]
  %v131 = vld [vmem:[%s3 + $0x198] sm:$0xf]
  %v132 = vld [vmem:[%s3 + $0x19c] sm:$0xf]
  %v133 = vld [vmem:[%s3 + $0x1a0] sm:$0xf]
  %v134 = vld [vmem:[%s3 + $0x1a4] sm:$0xf]
  %v135 = vld [vmem:[%s3 + $0x1a8] sm:$0xf]
  %v136 = vld [vmem:[%s3 + $0x1ac] sm:$0xf]
  %v137 = vld [vmem:[%s3 + $0x1b0] sm:$0xf]
  %v138 = vld [vmem:[%s3 + $0x1b4] sm:$0xf]
  %v139 = vld [vmem:[%s3 + $0x1b8] sm:$0xf]
  %v140 = vld [vmem:[%s3 + $0x1bc] sm:$0xf]
  %v141 = vld [vmem:[%s3 + $0x1c0] sm:$0xf]
  %v142 = vld [vmem:[%s3 + $0x1c4] sm:$0xf]
  %v143 = vld [vmem:[%s3 + $0x1c8] sm:$0xf]
  %v144 = vld [vmem:[%s3 + $0x1cc] sm:$0xf]
  %v145 = vld [vmem:[%s3 + $0x1d0] sm:$0xf]
  %v146 = vld [vmem:[%s3 + $0x1d4] sm:$0xf]
  %v147 = vld [vmem:[%s3 + $0x1d8] sm:$0xf]
  %v148 = vld [vmem:[%s3 + $0x1dc] sm:$0xf]
  %v149 = vld [vmem:[%s3 + $0x1e0] sm:$0xf]
  %v150 = vld [vmem:[%s3 + $0x1e4] sm:$0xf]
  %v151 = vld [vmem:[%s3 + $0x1e8] sm:$0xf]
  %v152 = vld [vmem:[%s3 + $0x1ec] sm:$0xf]
  %v153 = vld [vmem:[%s3 + $0x1f0] sm:$0xf]
  %v154 = vld [vmem:[%s3 + $0x1f4] sm:$0xf]
  %v155 = vld [vmem:[%s3 + $0x1f8] sm:$0xf]
  %v156 = vld [vmem:[%s3 + $0x1fc] sm:$0xf]
  %v157 = vld [vmem:[%s1] sm:$0xff]
  %v162 = vunpack.c.l.b16 %v25
  %v163 = vunpack.c.h.b16 %v25
  %v164 = vunpack.c.l.b16 %v26
  %v165 = vunpack.c.h.b16 %v26
  %v166 = vunpack.c.l.b16 %v27
  %v167 = vunpack.c.h.b16 %v27
  %v168 = vunpack.c.l.b16 %v28
  %v169 = vunpack.c.h.b16 %v28
  %v170 = vpack.c.b16 %v162, %v162
  %v171 = vpack.c.b16 %v163, %v163
  %v172 = vpack.c.b16 %v164, %v164
  %v173 = vpack.c.b16 %v165, %v165
  %v174 = vpack.c.b16 %v166, %v166
  %v175 = vpack.c.b16 %v167, %v167
  %v176 = vpack.c.b16 %v168, %v168
  %v177 = vpack.c.b16 %v169, %v169
  %v314 = vunpack.c.l.b16 %v29
  %v315 = vunpack.c.l.b16 %v30
  %v316 = vunpack.c.l.b16 %v31
  %v317 = vunpack.c.l.b16 %v32
  %v318 = vunpack.c.l.b16 %v33
  %v319 = vunpack.c.l.b16 %v34
  %v320 = vunpack.c.l.b16 %v35
  %v321 = vunpack.c.l.b16 %v36
  %v322 = vunpack.c.l.b16 %v37
  %v323 = vunpack.c.l.b16 %v38
  %v324 = vunpack.c.l.b16 %v39
  %v325 = vunpack.c.l.b16 %v40
  %v326 = vunpack.c.l.b16 %v41
  %v327 = vunpack.c.l.b16 %v42
  %v328 = vunpack.c.l.b16 %v43
  %v329 = vunpack.c.l.b16 %v44
  %v330 = vunpack.c.l.b16 %v45
  %v331 = vunpack.c.l.b16 %v46
  %v332 = vunpack.c.l.b16 %v47
  %v333 = vunpack.c.l.b16 %v48
  %v334 = vunpack.c.l.b16 %v49
  %v335 = vunpack.c.l.b16 %v50
  %v336 = vunpack.c.l.b16 %v51
  %v337 = vunpack.c.l.b16 %v52
  %v338 = vunpack.c.l.b16 %v53
  %v339 = vunpack.c.l.b16 %v54
  %v340 = vunpack.c.l.b16 %v55
  %v341 = vunpack.c.l.b16 %v56
  %v342 = vunpack.c.l.b16 %v57
  %v343 = vunpack.c.l.b16 %v58
  %v344 = vunpack.c.l.b16 %v59
  %v345 = vunpack.c.l.b16 %v60
  %v346 = vunpack.c.l.b16 %v61
  %v347 = vunpack.c.l.b16 %v62
  %v348 = vunpack.c.l.b16 %v63
  %v349 = vunpack.c.l.b16 %v64
  %v350 = vunpack.c.l.b16 %v65
  %v351 = vunpack.c.l.b16 %v66
  %v352 = vunpack.c.l.b16 %v67
  %v353 = vunpack.c.l.b16 %v68
  %v354 = vunpack.c.l.b16 %v69
  %v355 = vunpack.c.l.b16 %v70
  %v356 = vunpack.c.l.b16 %v71
  %v357 = vunpack.c.l.b16 %v72
  %v358 = vunpack.c.l.b16 %v73
  %v359 = vunpack.c.l.b16 %v74
  %v360 = vunpack.c.l.b16 %v75
  %v361 = vunpack.c.l.b16 %v76
  %v362 = vunpack.c.l.b16 %v77
  %v363 = vunpack.c.l.b16 %v78
  %v364 = vunpack.c.l.b16 %v79
  %v365 = vunpack.c.l.b16 %v80
  %v366 = vunpack.c.l.b16 %v81
  %v367 = vunpack.c.l.b16 %v82
  %v368 = vunpack.c.l.b16 %v83
  %v369 = vunpack.c.l.b16 %v84
  %v370 = vunpack.c.l.b16 %v85
  %v371 = vunpack.c.l.b16 %v86
  %v372 = vunpack.c.l.b16 %v87
  %v373 = vunpack.c.l.b16 %v88
  %v374 = vunpack.c.l.b16 %v89
  %v375 = vunpack.c.l.b16 %v90
  %v376 = vunpack.c.l.b16 %v91
  %v377 = vunpack.c.l.b16 %v92
  %v378 = vunpack.c.l.b16 %v93
  %v379 = vunpack.c.l.b16 %v94
  %v380 = vunpack.c.l.b16 %v95
  %v381 = vunpack.c.l.b16 %v96
  %v382 = vunpack.c.l.b16 %v97
  %v383 = vunpack.c.l.b16 %v98
  %v384 = vunpack.c.l.b16 %v99
  %v385 = vunpack.c.l.b16 %v100
  %v386 = vunpack.c.l.b16 %v101
  %v387 = vunpack.c.l.b16 %v102
  %v388 = vunpack.c.l.b16 %v103
  %v389 = vunpack.c.l.b16 %v104
  %v390 = vunpack.c.l.b16 %v105
  %v391 = vunpack.c.l.b16 %v106
  %v392 = vunpack.c.l.b16 %v107
  %v393 = vunpack.c.l.b16 %v108
  %v394 = vunpack.c.l.b16 %v109
  %v395 = vunpack.c.l.b16 %v110
  %v396 = vunpack.c.l.b16 %v111
  %v397 = vunpack.c.l.b16 %v112
  %v398 = vunpack.c.l.b16 %v113
  %v399 = vunpack.c.l.b16 %v114
  %v400 = vunpack.c.l.b16 %v115
  %v401 = vunpack.c.l.b16 %v116
  %v402 = vunpack.c.l.b16 %v117
  %v403 = vunpack.c.l.b16 %v118
  %v404 = vunpack.c.l.b16 %v119
  %v405 = vunpack.c.l.b16 %v120
  %v406 = vunpack.c.l.b16 %v121
  %v407 = vunpack.c.l.b16 %v122
  %v408 = vunpack.c.l.b16 %v123
  %v409 = vunpack.c.l.b16 %v124
  %v410 = vunpack.c.l.b16 %v125
  %v411 = vunpack.c.l.b16 %v126
  %v412 = vunpack.c.l.b16 %v127
  %v413 = vunpack.c.l.b16 %v128
  %v414 = vunpack.c.l.b16 %v129
  %v415 = vunpack.c.l.b16 %v130
  %v416 = vunpack.c.l.b16 %v131
  %v417 = vunpack.c.l.b16 %v132
  %v418 = vunpack.c.l.b16 %v133
  %v419 = vunpack.c.l.b16 %v134
  %v420 = vunpack.c.l.b16 %v135
  %v421 = vunpack.c.l.b16 %v136
  %v422 = vunpack.c.l.b16 %v137
  %v423 = vunpack.c.l.b16 %v138
  %v424 = vunpack.c.l.b16 %v139
  %v425 = vunpack.c.l.b16 %v140
  %v426 = vunpack.c.l.b16 %v141
  %v427 = vunpack.c.l.b16 %v142
  %v428 = vunpack.c.l.b16 %v143
  %v429 = vunpack.c.l.b16 %v144
  %v430 = vunpack.c.l.b16 %v145
  %v431 = vunpack.c.l.b16 %v146
  %v432 = vunpack.c.l.b16 %v147
  %v433 = vunpack.c.l.b16 %v148
  %v434 = vunpack.c.l.b16 %v149
  %v435 = vunpack.c.l.b16 %v150
  %v436 = vunpack.c.l.b16 %v151
  %v437 = vunpack.c.l.b16 %v152
  %v438 = vunpack.c.l.b16 %v153
  %v439 = vunpack.c.l.b16 %v154
  %v440 = vunpack.c.l.b16 %v155
  %v441 = vunpack.c.l.b16 %v156
  %v442 = vpack.c.b16 %v315, %v314
  %v443 = vpack.c.b16 %v317, %v316
  %v444 = vpack.c.b16 %v319, %v318
  %v445 = vpack.c.b16 %v321, %v320
  %v446 = vpack.c.b16 %v323, %v322
  %v447 = vpack.c.b16 %v325, %v324
  %v448 = vpack.c.b16 %v327, %v326
  %v449 = vpack.c.b16 %v329, %v328
  %v450 = vpack.c.b16 %v331, %v330
  %v451 = vpack.c.b16 %v333, %v332
  %v452 = vpack.c.b16 %v335, %v334
  %v453 = vpack.c.b16 %v337, %v336
  %v454 = vpack.c.b16 %v339, %v338
  %v455 = vpack.c.b16 %v341, %v340
  %v456 = vpack.c.b16 %v343, %v342
  %v457 = vpack.c.b16 %v345, %v344
  %v458 = vpack.c.b16 %v347, %v346
  %v459 = vpack.c.b16 %v349, %v348
  %v460 = vpack.c.b16 %v351, %v350
  %v461 = vpack.c.b16 %v353, %v352
  %v462 = vpack.c.b16 %v355, %v354
  %v463 = vpack.c.b16 %v357, %v356
  %v464 = vpack.c.b16 %v359, %v358
  %v465 = vpack.c.b16 %v361, %v360
  %v466 = vpack.c.b16 %v363, %v362
  %v467 = vpack.c.b16 %v365, %v364
  %v468 = vpack.c.b16 %v367, %v366
  %v469 = vpack.c.b16 %v369, %v368
  %v470 = vpack.c.b16 %v371, %v370
  %v471 = vpack.c.b16 %v373, %v372
  %v472 = vpack.c.b16 %v375, %v374
  %v473 = vpack.c.b16 %v377, %v376
  %v474 = vpack.c.b16 %v379, %v378
  %v475 = vpack.c.b16 %v381, %v380
  %v476 = vpack.c.b16 %v383, %v382
  %v477 = vpack.c.b16 %v385, %v384
  %v478 = vpack.c.b16 %v387, %v386
  %v479 = vpack.c.b16 %v389, %v388
  %v480 = vpack.c.b16 %v391, %v390
  %v481 = vpack.c.b16 %v393, %v392
  %v482 = vpack.c.b16 %v395, %v394
  %v483 = vpack.c.b16 %v397, %v396
  %v484 = vpack.c.b16 %v399, %v398
  %v485 = vpack.c.b16 %v401, %v400
  %v486 = vpack.c.b16 %v403, %v402
  %v487 = vpack.c.b16 %v405, %v404
  %v488 = vpack.c.b16 %v407, %v406
  %v489 = vpack.c.b16 %v409, %v408
  %v490 = vpack.c.b16 %v411, %v410
  %v491 = vpack.c.b16 %v413, %v412
  %v492 = vpack.c.b16 %v415, %v414
  %v493 = vpack.c.b16 %v417, %v416
  %v494 = vpack.c.b16 %v419, %v418
  %v495 = vpack.c.b16 %v421, %v420
  %v496 = vpack.c.b16 %v423, %v422
  %v497 = vpack.c.b16 %v425, %v424
  %v498 = vpack.c.b16 %v427, %v426
  %v499 = vpack.c.b16 %v429, %v428
  %v500 = vpack.c.b16 %v431, %v430
  %v501 = vpack.c.b16 %v433, %v432
  %v502 = vpack.c.b16 %v435, %v434
  %v503 = vpack.c.b16 %v437, %v436
  %v504 = vpack.c.b16 %v439, %v438
  %v505 = vpack.c.b16 %v441, %v440
  %570 = vmatprep.subr.bf16.mxu0 0
  %571 = vmatpush1.bf16.msra.mxu0 %v449
  %572 = vmatprep.subr.bf16.mxu0 0
  %573 = vmatpush1.bf16.msra.mxu0 %v448
  %574 = vmatprep.subr.bf16.mxu0 0
  %575 = vmatpush1.bf16.msra.mxu0 %v447
  %576 = vmatprep.subr.bf16.mxu0 0
  %577 = vmatpush1.bf16.msra.mxu0 %v446
  %578 = vmatprep.subr.bf16.mxu0 0
  %579 = vmatpush1.bf16.msra.mxu0 %v445
  %580 = vmatprep.subr.bf16.mxu0 0
  %581 = vmatpush1.bf16.msra.mxu0 %v444
  %582 = vmatprep.subr.bf16.mxu0 0
  %583 = vmatpush1.bf16.msra.mxu0 %v443
  %584 = vmatprep.subr.bf16.mxu0 0
  %585 = vmatpush1.bf16.msra.mxu0 %v442
  %586 = vmatprep.subr.bf16.mxu0 0
  %587 = vmatpush2.bf16.msra.mxu0 %v457
  %588 = vmatprep.subr.bf16.mxu0 0
  %589 = vmatpush2.bf16.msra.mxu0 %v456
  %590 = vmatprep.subr.bf16.mxu0 0
  %591 = vmatpush2.bf16.msra.mxu0 %v455
  %592 = vmatprep.subr.bf16.mxu0 0
  %593 = vmatpush2.bf16.msra.mxu0 %v454
  %594 = vmatprep.subr.bf16.mxu0 0
  %595 = vmatpush2.bf16.msra.mxu0 %v453
  %596 = vmatprep.subr.bf16.mxu0 0
  %597 = vmatpush2.bf16.msra.mxu0 %v452
  %598 = vmatprep.subr.bf16.mxu0 0
  %599 = vmatpush2.bf16.msra.mxu0 %v451
  %600 = vmatprep.subr.bf16.mxu0 0
  %601 = vmatpush2.bf16.msra.mxu0 %v450
  %602 = vmatprep.mubr.bf16.mxu0 %v171
  %603 = vmatmul.mubr.bf16.gmra.mxu0 %v170
  %v604 = vpop.f32.mrf.mxu0
  %v605 = vadd.f32 %v157, %v604
  %v606 = vpop.f32.mrf.mxu0
  %v607 = vpop.f32.mrf.mxu0
  %v608 = vpop.f32.mrf.mxu0
  %609 = vdwg.mxu0
  %610 = vmatprep.subr.bf16.mxu0 0
  %611 = vmatpush1.bf16.msra.mxu0 %v465
  %612 = vmatprep.subr.bf16.mxu0 0
  %613 = vmatpush1.bf16.msra.mxu0 %v464
  %614 = vmatprep.subr.bf16.mxu0 0
  %615 = vmatpush1.bf16.msra.mxu0 %v463
  %616 = vmatprep.subr.bf16.mxu0 0
  %617 = vmatpush1.bf16.msra.mxu0 %v462
  %618 = vmatprep.subr.bf16.mxu0 0
  %619 = vmatpush1.bf16.msra.mxu0 %v461
  %620 = vmatprep.subr.bf16.mxu0 0
  %621 = vmatpush1.bf16.msra.mxu0 %v460
  %622 = vmatprep.subr.bf16.mxu0 0
  %623 = vmatpush1.bf16.msra.mxu0 %v459
  %624 = vmatprep.subr.bf16.mxu0 0
  %625 = vmatpush1.bf16.msra.mxu0 %v458
  %626 = vmatprep.subr.bf16.mxu0 0
  %627 = vmatpush2.bf16.msra.mxu0 %v473
  %628 = vmatprep.subr.bf16.mxu0 0
  %629 = vmatpush2.bf16.msra.mxu0 %v472
  %630 = vmatprep.subr.bf16.mxu0 0
  %631 = vmatpush2.bf16.msra.mxu0 %v471
  %632 = vmatprep.subr.bf16.mxu0 0
  %633 = vmatpush2.bf16.msra.mxu0 %v470
  %634 = vmatprep.subr.bf16.mxu0 0
  %635 = vmatpush2.bf16.msra.mxu0 %v469
  %636 = vmatprep.subr.bf16.mxu0 0
  %637 = vmatpush2.bf16.msra.mxu0 %v468
  %638 = vmatprep.subr.bf16.mxu0 0
  %639 = vmatpush2.bf16.msra.mxu0 %v467
  %640 = vmatprep.subr.bf16.mxu0 0
  %641 = vmatpush2.bf16.msra.mxu0 %v466
  %642 = vmatprep.mubr.bf16.mxu0 %v173
  %643 = vmatmul.mubr.bf16.gmra.mxu0 %v172
  %v644 = vpop.f32.mrf.mxu0
  %v645 = vadd.f32 %v605, %v644
  %v646 = vpop.f32.mrf.mxu0
  %v647 = vpop.f32.mrf.mxu0
  %v648 = vpop.f32.mrf.mxu0
  %649 = vdwg.mxu0
  %650 = vmatprep.subr.bf16.mxu0 0
  %651 = vmatpush1.bf16.msra.mxu0 %v481
  %652 = vmatprep.subr.bf16.mxu0 0
  %653 = vmatpush1.bf16.msra.mxu0 %v480
  %654 = vmatprep.subr.bf16.mxu0 0
  %655 = vmatpush1.bf16.msra.mxu0 %v479
  %656 = vmatprep.subr.bf16.mxu0 0
  %657 = vmatpush1.bf16.msra.mxu0 %v478
  %658 = vmatprep.subr.bf16.mxu0 0
  %659 = vmatpush1.bf16.msra.mxu0 %v477
  %660 = vmatprep.subr.bf16.mxu0 0
  %661 = vmatpush1.bf16.msra.mxu0 %v476
  %662 = vmatprep.subr.bf16.mxu0 0
  %663 = vmatpush1.bf16.msra.mxu0 %v475
  %664 = vmatprep.subr.bf16.mxu0 0
  %665 = vmatpush1.bf16.msra.mxu0 %v474
  %666 = vmatprep.subr.bf16.mxu0 0
  %667 = vmatpush2.bf16.msra.mxu0 %v489
  %668 = vmatprep.subr.bf16.mxu0 0
  %669 = vmatpush2.bf16.msra.mxu0 %v488
  %670 = vmatprep.subr.bf16.mxu0 0
  %671 = vmatpush2.bf16.msra.mxu0 %v487
  %672 = vmatprep.subr.bf16.mxu0 0
  %673 = vmatpush2.bf16.msra.mxu0 %v486
  %674 = vmatprep.subr.bf16.mxu0 0
  %675 = vmatpush2.bf16.msra.mxu0 %v485
  %676 = vmatprep.subr.bf16.mxu0 0
  %677 = vmatpush2.bf16.msra.mxu0 %v484
  %678 = vmatprep.subr.bf16.mxu0 0
  %679 = vmatpush2.bf16.msra.mxu0 %v483
  %680 = vmatprep.subr.bf16.mxu0 0
  %681 = vmatpush2.bf16.msra.mxu0 %v482
  %682 = vmatprep.mubr.bf16.mxu0 %v175
  %683 = vmatmul.mubr.bf16.gmra.mxu0 %v174
  %v684 = vpop.f32.mrf.mxu0
  %v685 = vadd.f32 %v645, %v684
  %v686 = vpop.f32.mrf.mxu0
  %v687 = vpop.f32.mrf.mxu0
  %v688 = vpop.f32.mrf.mxu0
  %689 = vdwg.mxu0
  %690 = vmatprep.subr.bf16.mxu0 0
  %691 = vmatpush1.bf16.msra.mxu0 %v497
  %692 = vmatprep.subr.bf16.mxu0 0
  %693 = vmatpush1.bf16.msra.mxu0 %v496
  %694 = vmatprep.subr.bf16.mxu0 0
  %695 = vmatpush1.bf16.msra.mxu0 %v495
  %696 = vmatprep.subr.bf16.mxu0 0
  %697 = vmatpush1.bf16.msra.mxu0 %v494
  %698 = vmatprep.subr.bf16.mxu0 0
  %699 = vmatpush1.bf16.msra.mxu0 %v493
  %700 = vmatprep.subr.bf16.mxu0 0
  %701 = vmatpush1.bf16.msra.mxu0 %v492
  %702 = vmatprep.subr.bf16.mxu0 0
  %703 = vmatpush1.bf16.msra.mxu0 %v491
  %704 = vmatprep.subr.bf16.mxu0 0
  %705 = vmatpush1.bf16.msra.mxu0 %v490
  %706 = vmatprep.subr.bf16.mxu0 0
  %707 = vmatpush2.bf16.msra.mxu0 %v505
  %708 = vmatprep.subr.bf16.mxu0 0
  %709 = vmatpush2.bf16.msra.mxu0 %v504
  %710 = vmatprep.subr.bf16.mxu0 0
  %711 = vmatpush2.bf16.msra.mxu0 %v503
  %712 = vmatprep.subr.bf16.mxu0 0
  %713 = vmatpush2.bf16.msra.mxu0 %v502
  %714 = vmatprep.subr.bf16.mxu0 0
  %715 = vmatpush2.bf16.msra.mxu0 %v501
  %716 = vmatprep.subr.bf16.mxu0 0
  %717 = vmatpush2.bf16.msra.mxu0 %v500
  %718 = vmatprep.subr.bf16.mxu0 0
  %719 = vmatpush2.bf16.msra.mxu0 %v499
  %720 = vmatprep.subr.bf16.mxu0 0
  %721 = vmatpush2.bf16.msra.mxu0 %v498
  %722 = vmatprep.mubr.bf16.mxu0 %v177
  %723 = vmatmul.mubr.bf16.gmra.mxu0 %v176
  %v724 = vpop.f32.mrf.mxu0
  %v725 = vadd.f32 %v685, %v724
  %v726 = vpop.f32.mrf.mxu0
  %v727 = vpop.f32.mrf.mxu0
  %v728 = vpop.f32.mrf.mxu0
  %729 = vdwg.mxu0
  %vm730 = vcmp.gt.f32.partialorder %v725, 0.0
  %v731 = vmul.f32 %v725, 0.2
  %v732 = vsel %vm730, %v725, %v731
  %v733 = vld [vmem:[%s2] sm:$0xff]
  %v734 = vmul.f32 %v732, %v733
  %v735 = vld [vmem:[%s4] sm:$0x1]
  %v737 = vlaneseq
  %v738 = vshrl.u32 %v737, 7
  %v739 = vsub.s32 0, %v738
  %v740 = vrot.slane %v735, %v739
  %v742 = vmul.f32 %v734, %v740
  %vm743 = vcmask 261120
  %v744 = vsel %vm743, %v742, 0.0
  %745 = vadd.xlane.f32.xlu0 %v744
  %v746 = vpop.xlane.xlu0 %745
  %s747 = sld [smem:[#allocation2]]
  %v748 = vstv %s747
  %v749 = vadd.f32 %v746, %v748
  %v750 = vxor.u32 %v749, 2147483648
  %v751 = vmul.f32 %v750, 1.442695
  %v752 = vpow.pop %v751
  %v753 = vadd.f32 %v752, 1.0
  %v754 = vrcp.pop %v753
  %v755 = vmul.f32 1.0, %v754
  %v757 = vlaneseq
  %v758 = vand.u32 %v757, 127
  %v759 = vlaneseq
  %v760 = vshrl.u32 %v759, 7
  %v761 = vsub.s32 %v758, %v760
  %v762 = vrot.slane %v755, %v761
  %vm764 = vcmask 57344
  %765 = vst.msk [vmem:[%s6] sm:$0x1] %vm764, %v762
  // Predicated region
  $region26: #{base_discriminator_forward.1} parent=0 // pred_check
    _
  $region27: #{base_discriminator_forward.1} parent=0 // pred_check_branch
    %767 = sbr.rel (0) target = $region29
  $region28: #{base_discriminator_forward.1} parent=0 // pred_region
    _
  $region29: #{base_discriminator_forward.1} parent=0 // pred_fallthru
    _
  // Predicated region
  $region30: #{base_discriminator_forward.1} parent=0 // pred_check
    _
  $region31: #{base_discriminator_forward.1} parent=0 // pred_check_branch
    %769 = sbr.rel (0) target = $region33
  $region32: #{base_discriminator_forward.1} parent=0 // pred_region
    _
  $region33: #{base_discriminator_forward.1} parent=0 // pred_fallthru
    _

</llo_original>
